<compile_context>
chip_gen: v6e
topology: v6e:2x2x1
jax: 0.10.0
libtpu: 0.0.40
codegen_flags: <defaults>
</compile_context>

<pallas_src>
import functools

import jax
import jax.numpy as jnp
from jax.experimental import pallas as pl
from jax.experimental.pallas import tpu as pltpu


_LANE = 128                                  # TPU lane width
_DEFAULT_VMEM_CAP = 64 * 1024 * 1024         # conservative fallback (v7x physical)


def _round_up(v, m):
    return (v + m - 1) // m * m


@functools.lru_cache(maxsize=1)
def _vmem_budget():
    """(tile budget bytes, vmem_limit_bytes) derived from this chip's VMEM."""
    try:
        cap = int(pltpu.get_tpu_info().vmem_capacity_bytes)
    except Exception:  # query unavailable -> stay conservative
        cap = _DEFAULT_VMEM_CAP
    limit = min(cap * 3 // 4, 112 * 1024 * 1024)   # leave headroom for Mosaic scratch
    budget = limit * 4 // 5
    return budget, limit


def _pick_tiles(M, K, Npad, itemsize, budget):
    """Choose (tm, tn, tk) row / lane / reduction tiles that fit the VMEM budget."""
    M8 = max(8, _round_up(M, 8))
    tm = min(2048, M8)
    tn = min(Npad, 2048)
    tk = K

    def fits(tm_, tn_, tk_):
        # x / weight / bias / out tiles are double-buffered by the BlockSpec
        # pipeline, plus one single-buffered f32 accumulator tile.
        dbuf = 2 * (tm_ * tk_ + tk_ * tn_ + tn_ + tm_ * tn_) * itemsize
        return dbuf + tm_ * tn_ * 4 <= budget

    # Shrink the reduction (K) tile first -- keeps the row tile (and hence HBM
    # streaming of the big activation) large -- then the lane tile, then rows.
    while not fits(tm, tn, tk) and tk > 512:
        tk = max(512, _round_up((tk + 1) // 2, _LANE))
    while not fits(tm, tn, tk) and tn > 512:
        tn = max(512, (tn // 2) // _LANE * _LANE)
    while not fits(tm, tn, tk) and tm > 512:
        tm = max(512, _round_up(tm // 2, 8))
    while not fits(tm, tn, tk) and tk > _LANE:
        tk = max(_LANE, _round_up((tk + 1) // 2, _LANE))
    while not fits(tm, tn, tk) and tn > _LANE:
        tn = max(_LANE, (tn // 2) // _LANE * _LANE)
    while not fits(tm, tn, tk) and tm > 8:
        tm = max(8, _round_up(tm // 2, 8))

    # On large problems keep >= 8 row steps so the software pipeline overlaps
    # DMA with compute (and multi-TC chips can shard the "parallel" row axis),
    # but never drop below 512-row tiles (HBM-roofline knee on single-TC chips).
    if M8 >= 8 * 512:
        while tm > 512 and pl.cdiv(M, tm) < 8:
            tm //= 2
    return tm, tn, tk


def _make_linear_kernel(k_total, tk):
    """Tiled y = x @ w + b with an f32 VMEM accumulator over the K grid axis."""
    k_rem = k_total % tk  # nonzero iff the last K block runs past the edge

    def kernel(x_ref, w_ref, b_ref, o_ref, acc_ref):
        k = pl.program_id(2)

        @pl.when(k == 0)
        def _init():
            acc_ref[...] = jnp.zeros_like(acc_ref)

        x = x_ref[...]
        w = w_ref[...]
        if k_rem:
            # The last (partial) K block streams undefined data past the
            # contraction edge; zero that tail out of both operands.
            base = k * tk
            kcol = jax.lax.broadcasted_iota(jnp.int32, x.shape, dimension=1)
            krow = jax.lax.broadcasted_iota(jnp.int32, w.shape, dimension=0)
            x = jnp.where(base + kcol < k_total, x, 0.0)
            w = jnp.where(base + krow < k_total, w, 0.0)

        acc_ref[...] += jnp.dot(x, w, preferred_element_type=jnp.float32)

        @pl.when(k == pl.num_programs(2) - 1)
        def _finalize():
            o_ref[...] = (acc_ref[...] + b_ref[...]).astype(o_ref.dtype)

    return kernel


def _linear_pallas(x2d, w_t_pad, b_pad, tile_overrides=None):
    """y_pad = x2d @ w_t_pad + b_pad, returning the lane-padded (M, Npad) output."""
    M, K = x2d.shape
    Kw, Npad = w_t_pad.shape
    assert Kw == K, (Kw, K)
    itemsize = jnp.dtype(x2d.dtype).itemsize

    budget, vmem_limit = _vmem_budget()
    if tile_overrides is not None:
        tm, tn, tk = tile_overrides
    else:
        tm, tn, tk = _pick_tiles(M, K, Npad, itemsize, budget)

    grid = (pl.cdiv(M, tm), pl.cdiv(Npad, tn), pl.cdiv(K, tk))
    cost = pl.CostEstimate(
        flops=2 * M * K * Npad,
        transcendentals=0,
        bytes_accessed=itemsize * (M * K * grid[1] + K * Npad * grid[0]
                                   + Npad * grid[0] + M * Npad),
    )

    return pl.pallas_call(
        _make_linear_kernel(K, tk),
        out_shape=jax.ShapeDtypeStruct((M, Npad), x2d.dtype),
        grid_spec=pltpu.PrefetchScalarGridSpec(
            num_scalar_prefetch=0,
            grid=grid,
            in_specs=[
                pl.BlockSpec((tm, tk), lambda i, j, k: (i, k)),   # activation rows
                pl.BlockSpec((tk, tn), lambda i, j, k: (k, j)),   # weight tile
                pl.BlockSpec((1, tn), lambda i, j, k: (0, j)),    # bias row
            ],
            out_specs=pl.BlockSpec((tm, tn), lambda i, j, k: (i, j)),
            scratch_shapes=[pltpu.VMEM((tm, tn), jnp.float32)],
        ),
        compiler_params=pltpu.CompilerParams(
            dimension_semantics=("parallel", "parallel", "arbitrary"),
            vmem_limit_bytes=vmem_limit,
        ),
        cost_estimate=cost,
    )(x2d, w_t_pad, b_pad)


def prepare_linear_params(weight, bias):
    """One-time parameter prep (hoisted out of the per-call hot path).

    weight: (D_out, D_in), PyTorch nn.Linear convention; bias: (D_out,).
    Pre-transposes the weight to (D_in, D_out) and pads the output feature dim
    to a multiple of 128 so the kernel's stores are lane-dense (unmasked).
    """
    d_out, d_in = weight.shape
    n_pad = _round_up(d_out, _LANE)
    w_t = jnp.asarray(weight, jnp.float32).T            # (D_in, D_out)
    b = jnp.asarray(bias, jnp.float32).reshape(1, d_out)
    if n_pad != d_out:
        w_t = jnp.pad(w_t, ((0, 0), (0, n_pad - d_out)))
        b = jnp.pad(b, ((0, 0), (0, n_pad - d_out)))
    return {"w_t": w_t, "b": b, "d_in": d_in, "d_out": d_out}


def _small_problem(M, K, N):
    # Below this a standalone Pallas custom call is pure overhead compared with
    # an XLA-fused GEMM (MXU a few % occupied in both dims at K = N = 32).
    return M < 128 or M * K * N < 256 * 256 * 256


def time_distributed_linear(x, params, batch_first=True, use_pallas=None,
                            tile_overrides=None):
    """JAX/Pallas forward of TimeDistributed(nn.Linear(D_in, D_out))."""
    w_t, b, d_out = params["w_t"], params["b"], params["d_out"]

    squeeze_1d = x.ndim == 1
    if x.ndim <= 2:
        x2d = x.reshape(1, -1) if squeeze_1d else x
    else:
        x2d = x.reshape(-1, x.shape[-1])        # x.contiguous().view(-1, x.size(-1))

    M, K = x2d.shape
    if use_pallas is None:
        use_pallas = not _small_problem(M, K, d_out)

    if use_pallas:
        y = _linear_pallas(x2d, w_t, b, tile_overrides=tile_overrides)
        if y.shape[-1] != d_out:
            y = y[:, :d_out]                    # drop the lane padding
    else:
        # Tiny problems: let XLA fuse the GEMV; kernel launch would dominate.
        y = x2d @ w_t[:, :d_out] + b[:, :d_out]

    if x.ndim <= 2:
        return y.reshape(-1) if squeeze_1d else y
    if batch_first:
        return y.reshape(x.shape[0], -1, d_out)      # y.view(x.size(0), -1, N)
    return y.reshape(-1, x.shape[1], d_out)          # y.view(-1, x.size(1), N)


if __name__ == "__main__":
    key = jax.random.PRNGKey(0)
    kx, kw, kb, kx3, kw3, kb3 = jax.random.split(key, 6)

    # Shapes implied by the module's forward: batch=2, seq=8, hidden 32 -> 32.
    B, T, D_in, D_out = 2, 8, 32, 32
    x = jax.random.normal(kx, (B, T, D_in), dtype=jnp.float32)
    bound = 1.0 / jnp.sqrt(jnp.float32(D_in))
    weight = jax.random.uniform(kw, (D_out, D_in), jnp.float32, -bound, bound)
    bias = jax.random.uniform(kb, (D_out,), jnp.float32, -bound, bound)
    params = prepare_linear_params(weight, bias)

    y_ref = (x.reshape(-1, D_in) @ weight.T + bias).reshape(B, -1, D_out)

    # Force the Pallas path (the auto size guard routes these tiny shapes to XLA).
    y = jax.block_until_ready(time_distributed_linear(x, params, use_pallas=True))
    assert y.shape == (B, T, D_out), y.shape
    assert jnp.allclose(y, y_ref, atol=1e-5, rtol=1e-5)

    # Auto path (size-guarded XLA fallback for this size) must agree.
    y_auto = jax.block_until_ready(time_distributed_linear(x, params))
    assert jnp.allclose(y_auto, y_ref, atol=1e-5, rtol=1e-5)

    # Row count not a multiple of the tile: exercises the partial M block.
    x2 = jax.random.normal(kx, (3, 5, D_in), dtype=jnp.float32)
    y2 = jax.block_until_ready(time_distributed_linear(x2, params, use_pallas=True))
    y2_ref = (x2.reshape(-1, D_in) @ weight.T + bias).reshape(3, -1, D_out)
    assert y2.shape == (3, 5, D_out), y2.shape
    assert jnp.allclose(y2, y2_ref, atol=1e-5, rtol=1e-5)

    # 2-D input (the `len(x.size()) <= 2` branch of the module).
    x2d_in = jax.random.normal(kx, (7, D_in), dtype=jnp.float32)
    y2d = jax.block_until_ready(time_distributed_linear(x2d_in, params))
    assert jnp.allclose(y2d, x2d_in @ weight.T + bias, atol=1e-5, rtol=1e-5)

    # Exercise the M/N/K-tiled path (partial blocks on every axis, including the
    # masked reduction tail) by forcing small tiles on a slightly bigger layer.
    B3, T3, D_in3, D_out3 = 4, 53, 200, 192
    x3 = jax.random.normal(kx3, (B3, T3, D_in3), dtype=jnp.float32)
    bound3 = 1.0 / jnp.sqrt(jnp.float32(D_in3))
    weight3 = jax.random.uniform(kw3, (D_out3, D_in3), jnp.float32, -bound3, bound3)
    bias3 = jax.random.uniform(kb3, (D_out3,), jnp.float32, -bound3, bound3)
    params3 = prepare_linear_params(weight3, bias3)
    y3 = jax.block_until_ready(
        time_distributed_linear(x3, params3, use_pallas=True,
                                tile_overrides=(64, 128, 128)))
    y3_ref = (x3.reshape(-1, D_in3) @ weight3.T + bias3).reshape(B3, -1, D_out3)
    assert y3.shape == (B3, T3, D_out3), y3.shape
    assert jnp.allclose(y3, y3_ref, atol=1e-4, rtol=1e-4)

    print("KERNEL_OK")
</pallas_src>

<mosaic_0001>
module attributes {stable_mosaic.version = 11 : i64} {
  func.func @kernel(%arg0: i32, %arg1: i32, %arg2: i32, %arg3: memref<16x32xf32, #tpu.memory_space<vmem>>, %arg4: memref<32x128xf32, #tpu.memory_space<vmem>>, %arg5: memref<1x128xf32, #tpu.memory_space<vmem>>, %arg6: memref<16x128xf32, #tpu.memory_space<vmem>>, %arg7: memref<16x128xf32, #tpu.memory_space<vmem>>) attributes {dimension_semantics = [#tpu.dimension_semantics<parallel>, #tpu.dimension_semantics<parallel>, #tpu.dimension_semantics<arbitrary>], iteration_bounds = array<i64: 1, 1, 1>, scalar_prefetch = 0 : i64, scratch_operands = 1 : i64, tpu.core_type = #tpu.core_type<tc>, window_params = [{transform_indices = @transform_0, window_bounds = array<i64: 16, 32>}, {transform_indices = @transform_1, window_bounds = array<i64: 32, 128>}, {transform_indices = @transform_2, window_bounds = array<i64: 1, 128>}, {transform_indices = @transform_3, window_bounds = array<i64: 16, 128>}]} {
    %c0_i32 = arith.constant 0 : i32
    %0 = arith.cmpi eq, %arg2, %c0_i32 : i32
    %1 = arith.extui %0 : i1 to i32
    %c0_i32_0 = arith.constant 0 : i32
    %2 = arith.cmpi ne, %1, %c0_i32_0 : i32
    scf.if %2 {
      %cst_10 = arith.constant 0.000000e+00 : f32
      %12 = vector.broadcast %cst_10 : f32 to vector<16x128xf32>
      %c0_11 = arith.constant 0 : index
      %c0_12 = arith.constant 0 : index
      %13 = vector.load %arg7[%c0_11, %c0_12] : memref<16x128xf32, #tpu.memory_space<vmem>>, vector<16x128xf32>
      tpu.vector_store %arg7[%c0_11, %c0_12], %12 {strides = array<i32>} : memref<16x128xf32, #tpu.memory_space<vmem>>, vector<16x128xf32>,
    } else {
    }
    %c0 = arith.constant 0 : index
    %c0_1 = arith.constant 0 : index
    %3 = vector.load %arg3[%c0, %c0_1] : memref<16x32xf32, #tpu.memory_space<vmem>>, vector<16x32xf32>
    %c0_2 = arith.constant 0 : index
    %c0_3 = arith.constant 0 : index
    %4 = vector.load %arg4[%c0_2, %c0_3] : memref<32x128xf32, #tpu.memory_space<vmem>>, vector<32x128xf32>
    %c0_4 = arith.constant 0 : index
    %c0_5 = arith.constant 0 : index
    %5 = vector.load %arg7[%c0_4, %c0_5] : memref<16x128xf32, #tpu.memory_space<vmem>>, vector<16x128xf32>
    %cst = arith.constant dense<0.000000e+00> : vector<16x128xf32>
    %6 = tpu.matmul %3, %4, %cst {dimension_numbers = #tpu.dot_dimension_numbers<[1], [0], [0], [1], [0, 0, 1, 1], [], []>} : vector<16x32xf32>, vector<32x128xf32>, vector<16x128xf32> -> vector<16x128xf32>
    %7 = arith.addf %5, %6 : vector<16x128xf32>
    %c0_6 = arith.constant 0 : index
    %c0_7 = arith.constant 0 : index
    %8 = vector.load %arg7[%c0_6, %c0_7] : memref<16x128xf32, #tpu.memory_space<vmem>>, vector<16x128xf32>
    tpu.vector_store %arg7[%c0_6, %c0_7], %7 {strides = array<i32>} : memref<16x128xf32, #tpu.memory_space<vmem>>, vector<16x128xf32>,
    %c0_i32_8 = arith.constant 0 : i32
    %9 = arith.cmpi eq, %arg2, %c0_i32_8 : i32
    %10 = arith.extui %9 : i1 to i32
    %c0_i32_9 = arith.constant 0 : i32
    %11 = arith.cmpi ne, %10, %c0_i32_9 : i32
    scf.if %11 {
      %c0_10 = arith.constant 0 : index
      %c0_11 = arith.constant 0 : index
      %12 = vector.load %arg7[%c0_10, %c0_11] : memref<16x128xf32, #tpu.memory_space<vmem>>, vector<16x128xf32>
      %c0_12 = arith.constant 0 : index
      %c0_13 = arith.constant 0 : index
      %13 = vector.load %arg5[%c0_12, %c0_13] : memref<1x128xf32, #tpu.memory_space<vmem>>, vector<1x128xf32>
      %14 = vector.broadcast %13 : vector<1x128xf32> to vector<16x128xf32>
      %15 = arith.addf %12, %14 : vector<16x128xf32>
      %c0_14 = arith.constant 0 : index
      %c0_15 = arith.constant 0 : index
      %16 = vector.load %arg6[%c0_14, %c0_15] : memref<16x128xf32, #tpu.memory_space<vmem>>, vector<16x128xf32>
      tpu.vector_store %arg6[%c0_14, %c0_15], %15 {strides = array<i32>} : memref<16x128xf32, #tpu.memory_space<vmem>>, vector<16x128xf32>,
    } else {
    }
    return
  }
  func.func @transform_0(%arg0: i32, %arg1: i32, %arg2: i32) -> (i32, i32) {
    %c0_i32 = arith.constant 0 : i32
    return %arg0, %arg2 : i32, i32
  }
  func.func @transform_1(%arg0: i32, %arg1: i32, %arg2: i32) -> (i32, i32) {
    %c0_i32 = arith.constant 0 : i32
    return %arg2, %arg1 : i32, i32
  }
  func.func @transform_2(%arg0: i32, %arg1: i32, %arg2: i32) -> (i32, i32) {
    %c0_i32 = arith.constant 0 : i32
    %c0_i32_0 = arith.constant 0 : i32
    return %c0_i32, %arg1 : i32, i32
  }
  func.func @transform_3(%arg0: i32, %arg1: i32, %arg2: i32) -> (i32, i32) {
    %c0_i32 = arith.constant 0 : i32
    return %arg0, %arg1 : i32, i32
  }
}

</mosaic_0001>

<llo_original>
// kernel: tpu_custom_call.1
$region0: #{tpu_custom_call.1}
  #allocation0 [shape = 'u32[]', space=smem, size = 0x4, offset = 0x4, fixed_abs, tag = 'smem constant byte address 0x4 - core index']
  #allocation1 [shape = 'u32[144,128]{1,0:T(1,128)}', space=vmem, size = 0x12000, scoped, tag = 'internal scratch']
  #allocation2 [shape = 'f32[16,128]{1,0:T(8,128)}', space=vmem, size = 0x2000, scoped, tag = 'scratch operand']
  %s0 = inlined_call_operand.hbm [shape: f32[16,32], index: 0, kind: input, shape index: {}]
  %s1 = inlined_call_operand.hbm [shape: f32[32,128], index: 1, kind: input, shape index: {}]
  %s2 = inlined_call_operand.vmem [shape: f32[1,128], index: 2, kind: input, shape index: {}]
  %s3 = inlined_call_operand.hbm [shape: f32[16,128], index: 3, kind: output, shape index: {}]
  %s4 = sld [smem:[#allocation0]]
  $region38: #{tpu_custom_call.1} parent=0
    _
  %s6 = ssub.s32 1, %s4
  %s7 = scalar_select 0, %s6, %s4
  $region1: #{tpu_custom_call.1} parent=0
    #allocation3 [shape = 'u8[8192]{0}', space=vmem, size = 0x2000, scoped, tag = 'input window, operand 0, single buffered']
    #allocation4 [shape = 's32[1]{0}', space=sflag, size = 0x4, scoped, tag = 'scoped memory for tpu_custom_call.1']
    #allocation5 [shape = 's32[1]{0}', space=sflag, size = 0x4, scoped, tag = 'scoped memory for tpu_custom_call.1']
    #allocation6 [shape = 'u8[16384]{0}', space=vmem, size = 0x4000, scoped, tag = 'input window, operand 1, single buffered']
    #allocation7 [shape = 's32[1]{0}', space=sflag, size = 0x4, scoped, tag = 'scoped memory for tpu_custom_call.1']
    #allocation8 [shape = 'u8[8192]{0}', space=vmem, size = 0x2000, scoped, tag = 'output window, operand 0, single buffered']
    %8 = vsyncpa [#allocation4], 0
    %9 = vsyncpa [#allocation7], 0
    %10 = vsyncpa [#allocation5], 0
    // Predicated region
    $region2: #{tpu_custom_call.1} parent=1 // pred_check
      _
    $region3: #{tpu_custom_call.1} parent=1 // pred_check_branch
      %12 = sbr.rel (0) target = $region5
    $region4: #{tpu_custom_call.1} parent=1 // pred_region
      %s14 = ssub.s32 256, 256
      %15 = vsyncadd [#allocation4], %s14
      %s16 = sshll.u32 [#allocation3], 4
      %s17 = int_to_ptr.vmem [resolvable:$true] %s16
      %22 = dma.hbm_to_vmem [thread:$0]  %s0, 256, %s17, [#allocation4], 128, 128, 8
    $region5: #{tpu_custom_call.1} parent=1 // pred_fallthru
      _
    // Predicated region
    $region6: #{tpu_custom_call.1} parent=1 // pred_check
      _
    $region7: #{tpu_custom_call.1} parent=1 // pred_check_branch
      %24 = sbr.rel (0) target = $region9
    $region8: #{tpu_custom_call.1} parent=1 // pred_region
      %s26 = ssub.s32 512, 512
      %27 = vsyncadd [#allocation7], %s26
      %s28 = sshll.u32 [#allocation6], 4
      %s29 = int_to_ptr.vmem [resolvable:$true] %s28
      %34 = dma.hbm_to_vmem [thread:$0]  %s1, 512, %s29, [#allocation7], 128, 128, 8
    $region9: #{tpu_custom_call.1} parent=1 // pred_fallthru
      _
    // Predicated region
    $region10: #{tpu_custom_call.1} parent=1 // pred_check
      _
    $region11: #{tpu_custom_call.1} parent=1 // pred_check_branch
      %36 = sbr.rel (0) target = $region13
    $region12: #{tpu_custom_call.1} parent=1 // pred_region
      _
    $region13: #{tpu_custom_call.1} parent=1 // pred_fallthru
      _
    // Predicated region
    $region14: #{tpu_custom_call.1} parent=1 // pred_check
      _
    $region15: #{tpu_custom_call.1} parent=1 // pred_check_branch
      %38 = sbr.rel (0) target = $region17
    $region16: #{tpu_custom_call.1} parent=1 // pred_region
      %39 = dma.done [#allocation4], 256
    $region17: #{tpu_custom_call.1} parent=1 // pred_fallthru
      _
    // Predicated region
    $region18: #{tpu_custom_call.1} parent=1 // pred_check
      _
    $region19: #{tpu_custom_call.1} parent=1 // pred_check_branch
      %41 = sbr.rel (0) target = $region21
    $region20: #{tpu_custom_call.1} parent=1 // pred_region
      %42 = dma.done [#allocation7], 512
    $region21: #{tpu_custom_call.1} parent=1 // pred_fallthru
      _
    %p43 = scmp.eq.s32.totalorder 0, 0
    // Predicated region
    $region22: #{tpu_custom_call.1} parent=1 // pred_check
      %p44 = pneg %p43
    $region23: #{tpu_custom_call.1} parent=1 // pred_check_branch
      %46 = sbr.rel (%p44) target = $region25
    $region24: #{tpu_custom_call.1} parent=1 // pred_region
      %47 = vst [vmem:[#allocation2] sm:$0xff] 0.0
      %48 = vst [vmem:[#allocation2 + $0x8] sm:$0xff] 0.0
    $region25: #{tpu_custom_call.1} parent=1 // pred_fallthru
      _
    %v49 = vld [vmem:[#allocation3] sm:$0xff]
    %v50 = vld [vmem:[#allocation3 + $0x8] sm:$0xff]
    %v51 = vld [vmem:[#allocation6] sm:$0xff]
    %v52 = vld [vmem:[#allocation6 + $0x8] sm:$0xff]
    %v53 = vld [vmem:[#allocation6 + $0x10] sm:$0xff]
    %v54 = vld [vmem:[#allocation6 + $0x18] sm:$0xff]
    %v55 = vld [vmem:[#allocation2] sm:$0xff]
    %v56 = vld [vmem:[#allocation2 + $0x8] sm:$0xff]
    %vm57 = vcmask 261120
    %v59 = vsel %vm57, %v49, 0
    %v62 = vsel %vm57, %v50, 0
    %64 = vmatprep.subr.mxu0 0.0
    %65 = vmatpush1.msra.mxu0 0.0
    %66 = vmatprep.subr.mxu0 0.0
    %67 = vmatpush1.msra.mxu0 0.0
    %68 = vmatprep.subr.mxu0 0.0
    %69 = vmatpush1.msra.mxu0 0.0
    %70 = vmatprep.subr.mxu0 0.0
    %71 = vmatpush1.msra.mxu0 0.0
    %72 = vmatprep.subr.mxu0 0.0
    %73 = vmatpush1.msra.mxu0 0.0
    %74 = vmatprep.subr.mxu0 0.0
    %75 = vmatpush1.msra.mxu0 0.0
    %76 = vmatprep.subr.mxu0 0.0
    %77 = vmatpush1.msra.mxu0 0.0
    %78 = vmatprep.subr.mxu0 0.0
    %79 = vmatpush1.msra.mxu0 0.0
    %80 = vmatprep.subr.mxu0 0.0
    %81 = vmatpush1.msra.mxu0 0.0
    %82 = vmatprep.subr.mxu0 0.0
    %83 = vmatpush1.msra.mxu0 0.0
    %84 = vmatprep.subr.mxu0 0.0
    %85 = vmatpush1.msra.mxu0 0.0
    %86 = vmatprep.subr.mxu0 0.0
    %87 = vmatpush1.msra.mxu0 0.0
    %88 = vmatprep.subr.mxu0 0.0
    %89 = vmatpush1.msra.mxu0 %v54
    %90 = vmatprep.subr.mxu0 0.0
    %91 = vmatpush1.msra.mxu0 %v53
    %92 = vmatprep.subr.mxu0 0.0
    %93 = vmatpush1.msra.mxu0 %v52
    %94 = vmatprep.subr.mxu0 0.0
    %95 = vmatpush1.msra.mxu0 %v51
    %96 = vmatprep.subr.mxu0 0.0
    %97 = vmatpush2.msra.mxu0 0.0
    %98 = vmatprep.subr.mxu0 0.0
    %99 = vmatpush2.msra.mxu0 0.0
    %100 = vmatprep.subr.mxu0 0.0
    %101 = vmatpush2.msra.mxu0 0.0
    %102 = vmatprep.subr.mxu0 0.0
    %103 = vmatpush2.msra.mxu0 0.0
    %104 = vmatprep.subr.mxu0 0.0
    %105 = vmatpush2.msra.mxu0 0.0
    %106 = vmatprep.subr.mxu0 0.0
    %107 = vmatpush2.msra.mxu0 0.0
    %108 = vmatprep.subr.mxu0 0.0
    %109 = vmatpush2.msra.mxu0 0.0
    %110 = vmatprep.subr.mxu0 0.0
    %111 = vmatpush2.msra.mxu0 0.0
    %112 = vmatprep.subr.mxu0 0.0
    %113 = vmatpush2.msra.mxu0 0.0
    %114 = vmatprep.subr.mxu0 0.0
    %115 = vmatpush2.msra.mxu0 0.0
    %116 = vmatprep.subr.mxu0 0.0
    %117 = vmatpush2.msra.mxu0 0.0
    %118 = vmatprep.subr.mxu0 0.0
    %119 = vmatpush2.msra.mxu0 0.0
    %120 = vmatprep.subr.mxu0 0.0
    %121 = vmatpush2.msra.mxu0 0.0
    %122 = vmatprep.subr.mxu0 0.0
    %123 = vmatpush2.msra.mxu0 0.0
    %124 = vmatprep.subr.mxu0 0.0
    %125 = vmatpush2.msra.mxu0 0.0
    %126 = vmatprep.subr.mxu0 0.0
    %127 = vmatpush2.msra.mxu0 0.0
    %128 = vmatprep.mubr.f32.mxu0 0.0
    %129 = vmatmul.mubr.f32.gmra.mxu0 %v59
    %v130 = vpop.f32.mrf.mxu0
    %v131 = vadd.f32 0.0, %v130
    %v132 = vpop.f32.mrf.mxu0
    %133 = vmatprep.mubr.f32.mxu0 0.0
    %134 = vmatmul.mubr.f32.gmra.mxu0 %v62
    %v135 = vpop.f32.mrf.mxu0
    %v136 = vadd.f32 0.0, %v135
    %v137 = vpop.f32.mrf.mxu0
    %138 = vdwg.mxu0
    %v139 = vadd.f32 %v55, %v131
    %v140 = vadd.f32 %v56, %v136
    %141 = vst [vmem:[#allocation2] sm:$0xff] %v139
    %142 = vst [vmem:[#allocation2 + $0x8] sm:$0xff] %v140
    // Predicated region
    $region26: #{tpu_custom_call.1} parent=1 // pred_check
      %p143 = pneg %p43
    $region27: #{tpu_custom_call.1} parent=1 // pred_check_branch
      %145 = sbr.rel (%p143) target = $region29
    $region28: #{tpu_custom_call.1} parent=1 // pred_region
      %v146 = vld [vmem:[#allocation2] sm:$0xff]
      %v147 = vld [vmem:[#allocation2 + $0x8] sm:$0xff]
      %v148 = vld [vmem:[%s2] sm:$0x1]
      %v150 = vlaneseq
      %v151 = vshrl.u32 %v150, 7
      %v152 = vsub.s32 0, %v151
      %v153 = vrot.slane %v148, %v152
      %v155 = vadd.f32 %v146, %v153
      %v156 = vadd.f32 %v147, %v153
      %157 = vst [vmem:[#allocation8] sm:$0xff] %v155
      %158 = vst [vmem:[#allocation8 + $0x8] sm:$0xff] %v156
    $region29: #{tpu_custom_call.1} parent=1 // pred_fallthru
      _
    // Predicated region
    $region30: #{tpu_custom_call.1} parent=1 // pred_check
      _
    $region31: #{tpu_custom_call.1} parent=1 // pred_check_branch
      %160 = sbr.rel (0) target = $region33
    $region32: #{tpu_custom_call.1} parent=1 // pred_region
      %s162 = ssub.s32 256, 256
      %163 = vsyncadd [#allocation5], %s162
      %s164 = sshll.u32 [#allocation8], 4
      %s165 = int_to_ptr.vmem [resolvable:$true] %s164
      %170 = dma.vmem_to_hbm [thread:$0]  %s165, 256, %s3, [#allocation5], 128, 128, 8
    $region33: #{tpu_custom_call.1} parent=1 // pred_fallthru
      _
    // Predicated region
    $region34: #{tpu_custom_call.1} parent=1 // pred_check
      _
    $region35: #{tpu_custom_call.1} parent=1 // pred_check_branch
      %172 = sbr.rel (0) target = $region37
    $region36: #{tpu_custom_call.1} parent=1 // pred_region
      %173 = dma.done [#allocation5], 256
    $region37: #{tpu_custom_call.1} parent=1 // pred_fallthru
      _
    %174 = vsyncpa [#allocation4], 1
    %175 = vsyncpa [#allocation7], 1
    %176 = vsyncpa [#allocation5], 1

</llo_original>
